<compile_context>
chip_gen: v6e
topology: v6e:2x2x1
jax: 0.10.0
libtpu: 0.0.40
codegen_flags: <defaults>
</compile_context>

<pallas_src>
import jax
import jax.numpy as jnp
from jax.experimental import pallas as pl
from jax.experimental.pallas import tpu as pltpu

EPS = 0.001  # matches nn.BatchNorm2d(eps=0.001)

# TODO(synk): BatchNorm2d running_mean/running_var (momentum=0.999) buffer
# updates are training-state side effects that do not affect this forward
# output; not implemented.


def _vmem_budgets():
    """Returns (vmem_limit_bytes, per-tile byte budget) per TPU generation."""
    kind = ""
    try:
        kind = jax.devices()[0].device_kind.lower()
    except Exception:
        pass
    if "v7" in kind or "7x" in kind:
        # 64 MiB VMEM per TensorCore: pass-2 working set is 4x tile, keep
        # total under ~36 MiB with headroom for Mosaic internal scratch.
        return 36 << 20, 6 << 20
    if "v5" in kind or "v6" in kind:
        # 128 MiB physical VMEM; raise the scoped limit so 8 MiB tiles
        # double-buffer cleanly (4x tile = 32 MiB for pass 2).
        return 64 << 20, 8 << 20
    # Unknown chip: conservative values that are safe everywhere.
    return 32 << 20, 6 << 20


def _round_up(x, m):
    return (x + m - 1) // m * m


def _reduce_kernel(x_ref, part_ref):
    # x_ref:    (R, thw) tile of the flattened (N*C, HW_pad) input
    # part_ref: (2, R, 1) resident accumulator for this outer (parallel) slice:
    #           row 0 = sum(x), row 1 = sum(x*x) over the inner tiles so far.
    @pl.when(pl.program_id(1) == 0)
    def _():
        part_ref[...] = jnp.zeros_like(part_ref)

    x = x_ref[...].astype(jnp.float32)                   # (R, thw)
    # sum(axis=-1) lowers to VPU adds over the thw/128 vregs per row plus one
    # in-vreg lane reduce; negligible next to the DMA stream feeding the tile.
    part_ref[0, :, :] += jnp.sum(x, axis=-1, keepdims=True)
    part_ref[1, :, :] += jnp.sum(x * x, axis=-1, keepdims=True)


def _normalize_kernel(stats_ref, x_ref, o_ref):
    # stats_ref: (2, R, 1): row 0 = scale (= w0 * inv_std), row 1 = mean*scale
    # x_ref/o_ref: (R, thw) lane-dense tiles
    scale = stats_ref[0, :, :]                           # (R, 1)
    shift = stats_ref[1, :, :]                           # (R, 1)
    x = x_ref[...].astype(jnp.float32)
    o_ref[...] = (x * scale - shift).astype(o_ref.dtype)


def adaptive_norm(x_nchw, w0):
    """x_nchw: (N, C, H, W); w0 scalar. Returns w0 * BN(x) with batch stats."""
    N, C, H, W = x_nchw.shape
    HW = H * W
    R = N * C
    x2 = x_nchw.reshape(R, HW)        # free reshape, no transpose

    vmem_limit, tile_budget = _vmem_budgets()

    # Lane-dense tile width (multiple of 128) sized to the per-chip budget.
    max_lanes = max(128, (tile_budget // (4 * R)) // 128 * 128)
    thw = min(_round_up(HW, 128), max_lanes)
    t_needed = -(-HW // thw)
    # Outer "parallel" split of the HW-tile axis so pass 1 can use both v7x
    # TensorCores even with a single image / odd batch.
    G = 2 if t_needed >= 2 else 1
    T = -(-t_needed // G)
    HW_pad = G * T * thw
    if HW_pad != HW:
        # Zero padding is exact for sum / sum-of-squares (divisor stays N*HW).
        x2 = jnp.pad(x2, ((0, 0), (0, HW_pad - HW)))

    # ---- Pass 1: per-row (= per image, per channel) sum / sum-of-squares ----
    partials = pl.pallas_call(
        _reduce_kernel,
        out_shape=jax.ShapeDtypeStruct((G, 2, R, 1), jnp.float32),
        grid=(G, T),
        in_specs=[pl.BlockSpec((R, thw), lambda g, t: (0, g * T + t))],
        out_specs=pl.BlockSpec((None, 2, R, 1), lambda g, t: (g, 0, 0, 0)),
        compiler_params=pltpu.CompilerParams(
            dimension_semantics=("parallel", "arbitrary"),
            vmem_limit_bytes=vmem_limit),
    )(x2)

    # ---- Tiny finalize on (C,)-sized vectors (negligible HBM traffic) -------
    tot = jnp.sum(partials, axis=0).reshape(2, N, C, 1).sum(axis=1)  # (2, C, 1)
    m = jnp.float32(N * HW)
    mean = tot[0] / m                                    # (C, 1)
    # TODO(synk): E[x^2]-mean^2 in f32 can lose precision when |mean| >> std;
    # a shifted-sums variant would match the centered reference more tightly.
    var = jnp.maximum(tot[1] / m - mean * mean, 0.0)
    scale = jnp.asarray(w0, jnp.float32) * jax.lax.rsqrt(var + EPS)
    shift = mean * scale
    stats = jnp.stack([jnp.tile(scale, (N, 1)),
                       jnp.tile(shift, (N, 1))], axis=0)  # (2, R, 1)

    # ---- Pass 2: normalize (fully parallel, lane-dense tiles) ---------------
    # (input_output_aliases={1: 0} could drop the extra HBM buffer if the
    #  caller no longer needs x; left off since x is reused by the caller.)
    out2 = pl.pallas_call(
        _normalize_kernel,
        out_shape=jax.ShapeDtypeStruct((R, HW_pad), x_nchw.dtype),
        grid=(G * T,),
        in_specs=[
            pl.BlockSpec((2, R, 1), lambda i: (0, 0, 0)),
            pl.BlockSpec((R, thw), lambda i: (0, i)),
        ],
        out_specs=pl.BlockSpec((R, thw), lambda i: (0, i)),
        compiler_params=pltpu.CompilerParams(
            dimension_semantics=("parallel",),
            vmem_limit_bytes=vmem_limit),
    )(stats, x2)

    if HW_pad != HW:
        out2 = out2[:, :HW]
    return out2.reshape(N, C, H, W)


def _reference(x_nchw, w0):
    mean = jnp.mean(x_nchw, axis=(0, 2, 3), keepdims=True)
    var = jnp.mean((x_nchw - mean) ** 2, axis=(0, 2, 3), keepdims=True)
    return w0 * (x_nchw - mean) / jnp.sqrt(var + EPS)


if __name__ == "__main__":
    key = jax.random.PRNGKey(0)
    N, C, H, W = 2, 4, 16, 16
    x = jax.random.normal(key, (N, C, H, W), dtype=jnp.float32) * 2.0 + 0.5

    # deterministic parameter init, matching nn.Parameter(torch.Tensor([1.0]))
    w0 = jnp.float32(1.0)

    out = adaptive_norm(x, w0)
    out = jax.block_until_ready(out)

    ref = _reference(x, w0)
    assert out.shape == (N, C, H, W)
    assert jnp.allclose(out, ref, atol=1e-4, rtol=1e-4)

    print("KERNEL_OK")
</pallas_src>

<mosaic_0001>
module attributes {stable_mosaic.version = 11 : i64} {
  func.func @_reduce_kernel(%arg0: i32, %arg1: i32, %arg2: memref<8x256xf32, #tpu.memory_space<vmem>>, %arg3: memref<1x2x8x1xf32, #tpu.memory_space<vmem>>) attributes {dimension_semantics = [#tpu.dimension_semantics<parallel>, #tpu.dimension_semantics<arbitrary>], iteration_bounds = array<i64: 1, 1>, scalar_prefetch = 0 : i64, scratch_operands = 0 : i64, tpu.core_type = #tpu.core_type<tc>, window_params = [{transform_indices = @transform_0, window_bounds = array<i64: 8, 256>}, {transform_indices = @transform_1, window_bounds = array<i64: 1, 2, 8, 1>}]} {
    %c0_i32 = arith.constant 0 : i32
    %0 = arith.cmpi eq, %arg1, %c0_i32 : i32
    %1 = arith.extui %0 : i1 to i32
    %c0_i32_0 = arith.constant 0 : i32
    %2 = arith.cmpi ne, %1, %c0_i32_0 : i32
    scf.if %2 {
      %cst_18 = arith.constant 0.000000e+00 : f32
      %21 = vector.broadcast %cst_18 : f32 to vector<2x8x1xf32>
      %c0_19 = arith.constant 0 : index
      %c0_20 = arith.constant 0 : index
      %c0_21 = arith.constant 0 : index
      %c0_22 = arith.constant 0 : index
      %22 = vector.load %arg3[%c0_19, %c0_20, %c0_21, %c0_22] : memref<1x2x8x1xf32, #tpu.memory_space<vmem>>, vector<1x2x8x1xf32>
      %23 = vector.shape_cast %22 : vector<1x2x8x1xf32> to vector<2x8x1xf32>
      %24 = vector.shape_cast %21 : vector<2x8x1xf32> to vector<1x2x8x1xf32>
      tpu.vector_store %arg3[%c0_19, %c0_20, %c0_21, %c0_22], %24 {strides = array<i32>} : memref<1x2x8x1xf32, #tpu.memory_space<vmem>>, vector<1x2x8x1xf32>,
    } else {
    }
    %c0 = arith.constant 0 : index
    %c0_1 = arith.constant 0 : index
    %3 = vector.load %arg2[%c0, %c0_1] : memref<8x256xf32, #tpu.memory_space<vmem>>, vector<8x256xf32>
    %c0_2 = arith.constant 0 : index
    %c0_3 = arith.constant 0 : index
    %c0_4 = arith.constant 0 : index
    %c0_5 = arith.constant 0 : index
    %4 = vector.load %arg3[%c0_2, %c0_3, %c0_4, %c0_5] : memref<1x2x8x1xf32, #tpu.memory_space<vmem>>, vector<1x1x8x1xf32>
    %5 = vector.shape_cast %4 : vector<1x1x8x1xf32> to vector<8x1xf32>
    %cst = arith.constant dense<0.000000e+00> : vector<8xf32>
    %6 = vector.multi_reduction <add>, %3, %cst [1] : vector<8x256xf32> to vector<8xf32>
    %7 = vector.shape_cast %6 : vector<8xf32> to vector<8x1xf32>
    %8 = arith.addf %5, %7 : vector<8x1xf32>
    %c0_6 = arith.constant 0 : index
    %c0_7 = arith.constant 0 : index
    %c0_8 = arith.constant 0 : index
    %c0_9 = arith.constant 0 : index
    %9 = vector.load %arg3[%c0_6, %c0_7, %c0_8, %c0_9] : memref<1x2x8x1xf32, #tpu.memory_space<vmem>>, vector<1x1x8x1xf32>
    %10 = vector.shape_cast %9 : vector<1x1x8x1xf32> to vector<8x1xf32>
    %11 = vector.shape_cast %8 : vector<8x1xf32> to vector<1x1x8x1xf32>
    tpu.vector_store %arg3[%c0_6, %c0_7, %c0_8, %c0_9], %11 {strides = array<i32>} : memref<1x2x8x1xf32, #tpu.memory_space<vmem>>, vector<1x1x8x1xf32>,
    %c0_10 = arith.constant 0 : index
    %c1 = arith.constant 1 : index
    %c0_11 = arith.constant 0 : index
    %c0_12 = arith.constant 0 : index
    %12 = vector.load %arg3[%c0_10, %c1, %c0_11, %c0_12] : memref<1x2x8x1xf32, #tpu.memory_space<vmem>>, vector<1x1x8x1xf32>
    %13 = vector.shape_cast %12 : vector<1x1x8x1xf32> to vector<8x1xf32>
    %14 = arith.mulf %3, %3 : vector<8x256xf32>
    %cst_13 = arith.constant dense<0.000000e+00> : vector<8xf32>
    %15 = vector.multi_reduction <add>, %14, %cst_13 [1] : vector<8x256xf32> to vector<8xf32>
    %16 = vector.shape_cast %15 : vector<8xf32> to vector<8x1xf32>
    %17 = arith.addf %13, %16 : vector<8x1xf32>
    %c0_14 = arith.constant 0 : index
    %c1_15 = arith.constant 1 : index
    %c0_16 = arith.constant 0 : index
    %c0_17 = arith.constant 0 : index
    %18 = vector.load %arg3[%c0_14, %c1_15, %c0_16, %c0_17] : memref<1x2x8x1xf32, #tpu.memory_space<vmem>>, vector<1x1x8x1xf32>
    %19 = vector.shape_cast %18 : vector<1x1x8x1xf32> to vector<8x1xf32>
    %20 = vector.shape_cast %17 : vector<8x1xf32> to vector<1x1x8x1xf32>
    tpu.vector_store %arg3[%c0_14, %c1_15, %c0_16, %c0_17], %20 {strides = array<i32>} : memref<1x2x8x1xf32, #tpu.memory_space<vmem>>, vector<1x1x8x1xf32>,
    return
  }
  func.func @transform_0(%arg0: i32, %arg1: i32) -> (i32, i32) {
    %c1_i32 = arith.constant 1 : i32
    %0 = arith.muli %arg0, %c1_i32 : i32
    %1 = arith.addi %0, %arg1 : i32
    %c0_i32 = arith.constant 0 : i32
    %c0_i32_0 = arith.constant 0 : i32
    return %c0_i32, %1 : i32, i32
  }
  func.func @transform_1(%arg0: i32, %arg1: i32) -> (i32, i32, i32, i32) {
    %c0_i32 = arith.constant 0 : i32
    %c0_i32_0 = arith.constant 0 : i32
    %c0_i32_1 = arith.constant 0 : i32
    %c0_i32_2 = arith.constant 0 : i32
    return %arg0, %c0_i32, %c0_i32_0, %c0_i32_1 : i32, i32, i32, i32
  }
}

</mosaic_0001>

<llo_original>
// kernel: tpu_custom_call.1
$region0: #{tpu_custom_call.1}
  #allocation0 [shape = 'u32[]', space=smem, size = 0x4, offset = 0x4, fixed_abs, tag = 'smem constant byte address 0x4 - core index']
  #allocation1 [shape = 'u32[144,128]{1,0:T(1,128)}', space=vmem, size = 0x12000, scoped, tag = 'internal scratch']
  %s0 = inlined_call_operand.hbm [shape: f32[8,256], index: 0, kind: input, shape index: {}]
  %s1 = inlined_call_operand.vmem [shape: f32[1,2,8,1], index: 1, kind: output, shape index: {}]
  %s2 = sld [smem:[#allocation0]]
  $region22: #{tpu_custom_call.1} parent=0
    _
  %s4 = ssub.s32 1, %s2
  %s5 = scalar_select 0, %s4, %s2
  $region1: #{tpu_custom_call.1} parent=0
    #allocation2 [shape = 'u8[8192]{0}', space=vmem, size = 0x2000, scoped, tag = 'input window, operand 0, single buffered']
    #allocation3 [shape = 's32[1]{0}', space=sflag, size = 0x4, scoped, tag = 'scoped memory for tpu_custom_call.1']
    %6 = vsyncpa [#allocation3], 0
    // Predicated region
    $region2: #{tpu_custom_call.1} parent=1 // pred_check
      _
    $region3: #{tpu_custom_call.1} parent=1 // pred_check_branch
      %8 = sbr.rel (0) target = $region5
    $region4: #{tpu_custom_call.1} parent=1 // pred_region
      %s9 = sadd.s32 0, 0
      %s10 = smul.u32 2, %s9
      %s12 = ssub.s32 256, 256
      %13 = vsyncadd [#allocation3], %s12
      %s14 = smul.addr %s10, 128
      %s15 = scalar_lea.hbm %s0, %s14
      %s17 = sshll.u32 [#allocation2], 4
      %s18 = int_to_ptr.vmem [resolvable:$true] %s17
      %20 = dma.hbm_to_vmem [thread:$0]  %s15, 256, %s18, [#allocation3]
    $region5: #{tpu_custom_call.1} parent=1 // pred_fallthru
      _
    // Predicated region
    $region6: #{tpu_custom_call.1} parent=1 // pred_check
      _
    $region7: #{tpu_custom_call.1} parent=1 // pred_check_branch
      %22 = sbr.rel (0) target = $region9
    $region8: #{tpu_custom_call.1} parent=1 // pred_region
      %23 = dma.done [#allocation3], 256
    $region9: #{tpu_custom_call.1} parent=1 // pred_fallthru
      _
    %s24 = sadd.s32 0, 0
    %s25 = smul.u32 2, %s24
    %p26 = scmp.eq.s32.totalorder 0, 0
    // Predicated region
    $region10: #{tpu_custom_call.1} parent=1 // pred_check
      %p27 = pneg %p26
    $region11: #{tpu_custom_call.1} parent=1 // pred_check_branch
      %29 = sbr.rel (%p27) target = $region13
    $region12: #{tpu_custom_call.1} parent=1 // pred_region
      %vm30 = vcmask 7168
      %31 = vst.msk [vmem:[%s1] sm:$0xff] %vm30, 0.0
      %32 = vst.msk [vmem:[%s1 + $0x8] sm:$0xff] %vm30, 0.0
    $region13: #{tpu_custom_call.1} parent=1 // pred_fallthru
      _
    %v33 = vld [vmem:[#allocation2] sm:$0xff]
    %v34 = vld [vmem:[#allocation2 + $0x8] sm:$0xff]
    %v35 = vld [vmem:[%s1] sm:$0xff]
    %v36 = vadd.f32 %v33, %v34
    %37 = vadd.xlane.f32.xlu0 %v36
    %v38 = vpop.xlane.xlu0 %37
    %v39 = vadd.f32 %v35, %v38
    %vm40 = vcmask 7168
    %41 = vst.msk [vmem:[%s1] sm:$0xff] %vm40, %v39
    %s42 = scalar_lea.vmem %s1, 8
    %v43 = vld [vmem:[%s42] sm:$0xff]
    %v44 = vmul.f32 %v33, %v33
    %v45 = vmul.f32 %v34, %v34
    %v46 = vadd.f32 %v44, %v45
    %47 = vadd.xlane.f32.xlu0 %v46
    %v48 = vpop.xlane.xlu0 %47
    %v49 = vadd.f32 %v43, %v48
    %50 = vst.msk [vmem:[%s42] sm:$0xff] %vm40, %v49
    // Predicated region
    $region14: #{tpu_custom_call.1} parent=1 // pred_check
      _
    $region15: #{tpu_custom_call.1} parent=1 // pred_check_branch
      %52 = sbr.rel (0) target = $region17
    $region16: #{tpu_custom_call.1} parent=1 // pred_region
      _
    $region17: #{tpu_custom_call.1} parent=1 // pred_fallthru
      _
    // Predicated region
    $region18: #{tpu_custom_call.1} parent=1 // pred_check
      _
    $region19: #{tpu_custom_call.1} parent=1 // pred_check_branch
      %54 = sbr.rel (0) target = $region21
    $region20: #{tpu_custom_call.1} parent=1 // pred_region
      _
    $region21: #{tpu_custom_call.1} parent=1 // pred_fallthru
      _
    %55 = vsyncpa [#allocation3], 1

</llo_original>
